<compile_context>
chip_gen: v6e
topology: v6e:2x2x1
jax: 0.10.0
libtpu: 0.0.40
codegen_flags: <defaults>
</compile_context>

<pallas_src>
import functools

import jax
import jax.numpy as jnp
from jax.experimental import pallas as pl
from jax.experimental.pallas import tpu as pltpu


# Single source of truth for slab layout: layer i's weight occupies slab rows
# [i*LW, (i+1)*LW) and its bias lives on row i of the trailing bias block.
_LAYERS = (("w1", "b1"), ("w2", "b2"), ("w31", "b31"), ("w32", "b32"),
           ("w4", "b4"), ("w5", "b5"), ("w6", "b6"))
_NUM_LAYERS = len(_LAYERS)
_BIAS_ROWS = 8  # >= _NUM_LAYERS, multiple of the 8-row sublane tile


def _round_up(v, m):
    return ((v + m - 1) // m) * m


def _vscnet_kernel(act_ref, w_ref, out_ref, *, n, lw):
    """Fused VSCNet forward.

    act_ref : [4n, lw]  rows 0:n   = x   (zero padded to lw lanes)
                        rows n:2n  = eps (zero padded)
                        rows 2n:4n = [eye(n); Coefficient] (cols 0:n real)
    w_ref   : [7*lw + 8, lw]  seven zero-padded [lw, lw] weight blocks
                              ([in, out] layout) + an [8, lw] bias block
                              (bias of layer i on row i, lanes 0:out_dim).
    out_ref : [n, 6*lw]  128-lane aligned segments mu|logvar|z|zc|h|x_rec.
    """
    # --- biases: one per sublane row (lane-aligned, hoistable off the chain)
    bias_block = w_ref[_NUM_LAYERS * lw:_NUM_LAYERS * lw + _BIAS_ROWS, :]
    b1, b2, b31, b32, b4, b5, b6 = (
        bias_block[i:i + 1, :] for i in range(_NUM_LAYERS))

    x = act_ref[0:n, :]                               # [n, lw]
    eps = act_ref[n:2 * n, :]                         # [n, lw]
    coef_aug = act_ref[2 * n:4 * n, :][:, :n]         # [2n, n] = [eye(n); C]

    def linear(v, layer, b):
        # Full [lw, lw] tile-aligned weight view; zero-padded rows/cols keep
        # the padded activation lanes exactly zero -> no masking anywhere.
        w = w_ref[layer * lw:(layer + 1) * lw, :]
        return jnp.dot(v, w, preferred_element_type=jnp.float32) + b

    # ---- encode ----
    h1 = jnp.maximum(linear(x, 0, b1), 0.0)
    h2 = jnp.maximum(linear(h1, 1, b2), 0.0)
    mu = linear(h2, 2, b31)                           # [n, lw], lanes >= z_dim are 0
    logvar = linear(h2, 3, b32)

    # ---- reparametrize (f32 EUP exp); eps padding lanes are 0 so z padding
    # lanes stay 0 even though exp(0.5*0) = 1 there.
    z = eps * jnp.exp(0.5 * logvar) + mu

    # ---- z and zc = Coefficient @ z in ONE matmul: [eye(n); C] @ z ----
    stacked = jnp.dot(coef_aug, z, preferred_element_type=jnp.float32)  # [2n, lw]

    # ---- decode z and zc in one stacked pass through the shared decoder ----
    h4 = jnp.maximum(linear(stacked, 4, b4), 0.0)
    h5 = jnp.maximum(linear(h4, 5, b5), 0.0)
    dec = linear(h5, 6, b6)                           # rows 0:n = h, n:2n = x_rec

    # ---- packed, lane-dense, 128-aligned output segments ----
    out_ref[:, 0 * lw:1 * lw] = mu
    out_ref[:, 1 * lw:2 * lw] = logvar
    out_ref[:, 2 * lw:3 * lw] = z
    out_ref[:, 3 * lw:4 * lw] = stacked[n:, :]        # zc = C @ z
    out_ref[:, 4 * lw:5 * lw] = dec[:n, :]            # h     = decode(z)
    out_ref[:, 5 * lw:6 * lw] = dec[n:, :]            # x_rec = decode(zc)


def pack_weight_slab(params, lw):
    """One [7*lw + 8, lw] f32 slab: seven zero-padded [lw, lw] weight blocks
    ([in_features, out_features] layout) followed by an 8-row bias block."""
    blocks, bias_rows = [], []
    for w_name, b_name in _LAYERS:
        w = params[w_name].astype(jnp.float32)
        b = params[b_name].astype(jnp.float32).reshape(-1)
        wi, wo = w.shape
        if wi > lw or wo > lw:
            raise ValueError("layer dims exceed slab lane width")
        blocks.append(jnp.zeros((lw, lw), jnp.float32).at[:wi, :wo].set(w))
        bias_rows.append(jnp.zeros((lw,), jnp.float32).at[:wo].set(b))
    bias_block = jnp.zeros((_BIAS_ROWS, lw), jnp.float32).at[:_NUM_LAYERS].set(
        jnp.stack(bias_rows))
    return jnp.concatenate(blocks + [bias_block], axis=0)


def _pad2(a, rows, cols):
    r, c = a.shape
    return jnp.pad(a.astype(jnp.float32), ((0, rows - r), (0, cols - c)))


def pack_activation_slab(x, eps, coef, lw):
    """[4n, lw] f32 slab: x | eps | [eye(n); Coefficient], each zero padded."""
    n = x.shape[0]
    coef_aug = jnp.concatenate(
        [jnp.eye(n, dtype=jnp.float32), coef.astype(jnp.float32)], axis=0)
    return jnp.concatenate(
        [_pad2(x, n, lw), _pad2(eps, n, lw), _pad2(coef_aug, 2 * n, lw)], axis=0)


def _vmem_limit_bytes(footprint_bytes):
    """Footprint-derived limit, capped well below physical VMEM (v7x: 64 MiB)."""
    try:
        phys = int(pltpu.get_tpu_info().vmem_capacity_bytes)
    except Exception:
        phys = 64 << 20  # be conservative: assume v7x per-TensorCore VMEM
    cap = max(8 << 20, phys - (16 << 20))  # leave compiler-scratch headroom
    return int(min(cap, max(8 << 20, 8 * int(footprint_bytes))))


def vscnet_forward(x, eps, params):
    """x: [n, X_dim] f32, eps: [n, z_dim] f32 (reparam noise).
    Returns (mu, logvar, z, zc, x_rec, h), matching the torch forward."""
    n, X_dim = x.shape
    z_dim = eps.shape[1]
    N = params["w1"].shape[1]
    M = params["w2"].shape[1]
    if n % 8 != 0:
        # TODO(synk): pad batch rows to a multiple of 8 (sublane tile) if needed.
        raise ValueError("batch n must be a multiple of 8")

    lw = _round_up(max(X_dim, N, M, z_dim, n), 128)   # uniform 128-lane width

    wslab = pack_weight_slab(params, lw)                      # [7*lw + 8, lw]
    act = pack_activation_slab(x, eps, params["coef"], lw)    # [4n, lw]

    out_shape = jax.ShapeDtypeStruct((n, 6 * lw), jnp.float32)
    vmem_spec = pl.BlockSpec(memory_space=pltpu.MemorySpace.VMEM)

    # Advisory cost estimate so XLA can overlap the custom call.
    flops = (2 * n * (X_dim * N + N * M + 2 * M * z_dim)       # encoder
             + 2 * (2 * n) * n * z_dim                         # [eye; C] @ z
             + 2 * (2 * n) * (z_dim * M + M * N + N * X_dim))  # stacked decode
    bytes_accessed = int(4 * (act.size + wslab.size + n * 6 * lw))
    cost = pl.CostEstimate(flops=int(flops), transcendentals=int(n * z_dim),
                           bytes_accessed=bytes_accessed)

    kernel = functools.partial(_vscnet_kernel, n=n, lw=lw)
    packed = pl.pallas_call(
        kernel,
        out_shape=out_shape,
        in_specs=[vmem_spec, vmem_spec],
        out_specs=vmem_spec,
        compiler_params=pltpu.CompilerParams(
            vmem_limit_bytes=_vmem_limit_bytes(bytes_accessed)),
        cost_estimate=cost,
    )(act, wslab)

    mu = packed[:, 0 * lw:0 * lw + z_dim]
    logvar = packed[:, 1 * lw:1 * lw + z_dim]
    z = packed[:, 2 * lw:2 * lw + z_dim]
    zc = packed[:, 3 * lw:3 * lw + z_dim]
    h = packed[:, 4 * lw:4 * lw + X_dim]
    x_rec = packed[:, 5 * lw:5 * lw + X_dim]
    return mu, logvar, z, zc, x_rec, h


def init_params(key, X_dim, z_dim, N, M, n):
    """Deterministic synthetic parameters (same shapes as the torch module)."""
    def linear_init(k, fan_in, fan_out):
        kw, kb = jax.random.split(k)
        bound = 1.0 / jnp.sqrt(fan_in)
        # stored pre-transposed: [in_features, out_features]
        w = jax.random.uniform(kw, (fan_in, fan_out), jnp.float32, -bound, bound)
        b = jax.random.uniform(kb, (1, fan_out), jnp.float32, -bound, bound)
        return w, b

    ks = jax.random.split(key, 7)
    params = {}
    params["w1"], params["b1"] = linear_init(ks[0], X_dim, N)
    params["w2"], params["b2"] = linear_init(ks[1], N, M)
    params["w31"], params["b31"] = linear_init(ks[2], M, z_dim)
    params["w32"], params["b32"] = linear_init(ks[3], M, z_dim)
    params["w4"], params["b4"] = linear_init(ks[4], z_dim, M)
    params["w5"], params["b5"] = linear_init(ks[5], M, N)
    params["w6"], params["b6"] = linear_init(ks[6], N, X_dim)
    # SelfExpression.Coefficient = 0.0001 * ones(n, n)
    params["coef"] = 0.0001 * jnp.ones((n, n), dtype=jnp.float32)
    return params


def reference_forward(x, eps, p):
    """Plain-JAX reference mirroring the PyTorch forward, for verification."""
    def lin(v, w, b):
        return v @ w + b
    h1 = jax.nn.relu(lin(x, p["w1"], p["b1"]))
    h2 = jax.nn.relu(lin(h1, p["w2"], p["b2"]))
    mu = lin(h2, p["w31"], p["b31"])
    logvar = lin(h2, p["w32"], p["b32"])
    std = jnp.exp(0.5 * logvar)
    z = eps * std + mu

    def decode(v):
        h4 = jax.nn.relu(lin(v, p["w4"], p["b4"]))
        h5 = jax.nn.relu(lin(h4, p["w5"], p["b5"]))
        return lin(h5, p["w6"], p["b6"])

    h = decode(z)
    zc = p["coef"] @ z
    x_rec = decode(zc)
    return mu, logvar, z, zc, x_rec, h


if __name__ == "__main__":
    # Small shapes consistent with the module: batch == n (self-expression over batch).
    n = 8          # number of samples / size of self-expression Coefficient
    X_dim = 32     # input feature dim
    N_hid = 64     # fc1 width
    M_hid = 32     # fc2 width
    z_dim = 16     # latent dim
    n_clusters = 4  # unused in forward

    key = jax.random.PRNGKey(0)
    k_x, k_eps, k_params = jax.random.split(key, 3)

    x = jax.random.normal(k_x, (n, X_dim), dtype=jnp.float32)
    eps = jax.random.normal(k_eps, (n, z_dim), dtype=jnp.float32)
    params = init_params(k_params, X_dim, z_dim, N_hid, M_hid, n)

    refs = reference_forward(x, eps, params)
    names = ("mu", "logvar", "z", "zc", "x_rec", "h")

    outs = vscnet_forward(x, eps, params)
    outs = jax.block_until_ready(outs)
    for name, o, r in zip(names, outs, refs):
        assert o.shape == r.shape, (name, o.shape, r.shape)
        assert jnp.allclose(o, r, atol=1e-4, rtol=1e-4), (
            f"mismatch in {name}: max abs err {float(jnp.max(jnp.abs(o - r)))}")

    print("KERNEL_OK")
</pallas_src>

<mosaic_0001>
module attributes {stable_mosaic.version = 11 : i64} {
  func.func @_vscnet_kernel(%arg0: memref<32x128xf32, #tpu.memory_space<vmem>>, %arg1: memref<904x128xf32, #tpu.memory_space<vmem>>, %arg2: memref<8x768xf32, #tpu.memory_space<vmem>>) attributes {dimension_semantics = [], scalar_prefetch = 0 : i64, scratch_operands = 0 : i64, tpu.core_type = #tpu.core_type<tc>} {
    %c896 = arith.constant 896 : index
    %c0 = arith.constant 0 : index
    %0 = vector.load %arg1[%c896, %c0] : memref<904x128xf32, #tpu.memory_space<vmem>>, vector<8x128xf32>
    %1 = vector.extract_strided_slice %0 {offsets = [0, 0], sizes = [1, 128], strides = [1, 1]} : vector<8x128xf32> to vector<1x128xf32>
    %2 = vector.extract_strided_slice %0 {offsets = [1, 0], sizes = [1, 128], strides = [1, 1]} : vector<8x128xf32> to vector<1x128xf32>
    %3 = vector.extract_strided_slice %0 {offsets = [2, 0], sizes = [1, 128], strides = [1, 1]} : vector<8x128xf32> to vector<1x128xf32>
    %4 = vector.extract_strided_slice %0 {offsets = [3, 0], sizes = [1, 128], strides = [1, 1]} : vector<8x128xf32> to vector<1x128xf32>
    %5 = vector.extract_strided_slice %0 {offsets = [4, 0], sizes = [1, 128], strides = [1, 1]} : vector<8x128xf32> to vector<1x128xf32>
    %6 = vector.extract_strided_slice %0 {offsets = [5, 0], sizes = [1, 128], strides = [1, 1]} : vector<8x128xf32> to vector<1x128xf32>
    %7 = vector.extract_strided_slice %0 {offsets = [6, 0], sizes = [1, 128], strides = [1, 1]} : vector<8x128xf32> to vector<1x128xf32>
    %c0_0 = arith.constant 0 : index
    %c0_1 = arith.constant 0 : index
    %8 = vector.load %arg0[%c0_0, %c0_1] : memref<32x128xf32, #tpu.memory_space<vmem>>, vector<8x128xf32>
    %c8 = arith.constant 8 : index
    %c0_2 = arith.constant 0 : index
    %9 = vector.load %arg0[%c8, %c0_2] : memref<32x128xf32, #tpu.memory_space<vmem>>, vector<8x128xf32>
    %c16 = arith.constant 16 : index
    %c0_3 = arith.constant 0 : index
    %10 = vector.load %arg0[%c16, %c0_3] : memref<32x128xf32, #tpu.memory_space<vmem>>, vector<16x128xf32>
    %11 = vector.extract_strided_slice %10 {offsets = [0, 0], sizes = [16, 8], strides = [1, 1]} : vector<16x128xf32> to vector<16x8xf32>
    %c0_4 = arith.constant 0 : index
    %c0_5 = arith.constant 0 : index
    %12 = vector.load %arg1[%c0_4, %c0_5] : memref<904x128xf32, #tpu.memory_space<vmem>>, vector<128x128xf32>
    %cst = arith.constant dense<0.000000e+00> : vector<8x128xf32>
    %13 = tpu.matmul %8, %12, %cst {dimension_numbers = #tpu.dot_dimension_numbers<[1], [0], [0], [1], [0, 0, 1, 1], [], []>} : vector<8x128xf32>, vector<128x128xf32>, vector<8x128xf32> -> vector<8x128xf32>
    %14 = vector.broadcast %1 : vector<1x128xf32> to vector<8x128xf32>
    %15 = arith.addf %13, %14 : vector<8x128xf32>
    %cst_6 = arith.constant 0.000000e+00 : f32
    %16 = vector.broadcast %cst_6 : f32 to vector<8x128xf32>
    %17 = arith.maximumf %15, %16 : vector<8x128xf32>
    %c128 = arith.constant 128 : index
    %c0_7 = arith.constant 0 : index
    %18 = vector.load %arg1[%c128, %c0_7] : memref<904x128xf32, #tpu.memory_space<vmem>>, vector<128x128xf32>
    %cst_8 = arith.constant dense<0.000000e+00> : vector<8x128xf32>
    %19 = tpu.matmul %17, %18, %cst_8 {dimension_numbers = #tpu.dot_dimension_numbers<[1], [0], [0], [1], [0, 0, 1, 1], [], []>} : vector<8x128xf32>, vector<128x128xf32>, vector<8x128xf32> -> vector<8x128xf32>
    %20 = vector.broadcast %2 : vector<1x128xf32> to vector<8x128xf32>
    %21 = arith.addf %19, %20 : vector<8x128xf32>
    %cst_9 = arith.constant 0.000000e+00 : f32
    %22 = vector.broadcast %cst_9 : f32 to vector<8x128xf32>
    %23 = arith.maximumf %21, %22 : vector<8x128xf32>
    %c256 = arith.constant 256 : index
    %c0_10 = arith.constant 0 : index
    %24 = vector.load %arg1[%c256, %c0_10] : memref<904x128xf32, #tpu.memory_space<vmem>>, vector<128x128xf32>
    %cst_11 = arith.constant dense<0.000000e+00> : vector<8x128xf32>
    %25 = tpu.matmul %23, %24, %cst_11 {dimension_numbers = #tpu.dot_dimension_numbers<[1], [0], [0], [1], [0, 0, 1, 1], [], []>} : vector<8x128xf32>, vector<128x128xf32>, vector<8x128xf32> -> vector<8x128xf32>
    %26 = vector.broadcast %3 : vector<1x128xf32> to vector<8x128xf32>
    %27 = arith.addf %25, %26 : vector<8x128xf32>
    %c384 = arith.constant 384 : index
    %c0_12 = arith.constant 0 : index
    %28 = vector.load %arg1[%c384, %c0_12] : memref<904x128xf32, #tpu.memory_space<vmem>>, vector<128x128xf32>
    %cst_13 = arith.constant dense<0.000000e+00> : vector<8x128xf32>
    %29 = tpu.matmul %23, %28, %cst_13 {dimension_numbers = #tpu.dot_dimension_numbers<[1], [0], [0], [1], [0, 0, 1, 1], [], []>} : vector<8x128xf32>, vector<128x128xf32>, vector<8x128xf32> -> vector<8x128xf32>
    %30 = vector.broadcast %4 : vector<1x128xf32> to vector<8x128xf32>
    %31 = arith.addf %29, %30 : vector<8x128xf32>
    %cst_14 = arith.constant 5.000000e-01 : f32
    %32 = vector.broadcast %cst_14 : f32 to vector<8x128xf32>
    %33 = arith.mulf %32, %31 : vector<8x128xf32>
    %34 = math.exp %33 : vector<8x128xf32>
    %35 = arith.mulf %9, %34 : vector<8x128xf32>
    %36 = arith.addf %35, %27 : vector<8x128xf32>
    %cst_15 = arith.constant dense<0.000000e+00> : vector<16x128xf32>
    %37 = tpu.matmul %11, %36, %cst_15 {dimension_numbers = #tpu.dot_dimension_numbers<[1], [0], [0], [1], [0, 0, 1, 1], [], []>} : vector<16x8xf32>, vector<8x128xf32>, vector<16x128xf32> -> vector<16x128xf32>
    %c512 = arith.constant 512 : index
    %c0_16 = arith.constant 0 : index
    %38 = vector.load %arg1[%c512, %c0_16] : memref<904x128xf32, #tpu.memory_space<vmem>>, vector<128x128xf32>
    %cst_17 = arith.constant dense<0.000000e+00> : vector<16x128xf32>
    %39 = tpu.matmul %37, %38, %cst_17 {dimension_numbers = #tpu.dot_dimension_numbers<[1], [0], [0], [1], [0, 0, 1, 1], [], []>} : vector<16x128xf32>, vector<128x128xf32>, vector<16x128xf32> -> vector<16x128xf32>
    %40 = vector.broadcast %5 : vector<1x128xf32> to vector<16x128xf32>
    %41 = arith.addf %39, %40 : vector<16x128xf32>
    %cst_18 = arith.constant 0.000000e+00 : f32
    %42 = vector.broadcast %cst_18 : f32 to vector<16x128xf32>
    %43 = arith.maximumf %41, %42 : vector<16x128xf32>
    %c640 = arith.constant 640 : index
    %c0_19 = arith.constant 0 : index
    %44 = vector.load %arg1[%c640, %c0_19] : memref<904x128xf32, #tpu.memory_space<vmem>>, vector<128x128xf32>
    %cst_20 = arith.constant dense<0.000000e+00> : vector<16x128xf32>
    %45 = tpu.matmul %43, %44, %cst_20 {dimension_numbers = #tpu.dot_dimension_numbers<[1], [0], [0], [1], [0, 0, 1, 1], [], []>} : vector<16x128xf32>, vector<128x128xf32>, vector<16x128xf32> -> vector<16x128xf32>
    %46 = vector.broadcast %6 : vector<1x128xf32> to vector<16x128xf32>
    %47 = arith.addf %45, %46 : vector<16x128xf32>
    %cst_21 = arith.constant 0.000000e+00 : f32
    %48 = vector.broadcast %cst_21 : f32 to vector<16x128xf32>
    %49 = arith.maximumf %47, %48 : vector<16x128xf32>
    %c768 = arith.constant 768 : index
    %c0_22 = arith.constant 0 : index
    %50 = vector.load %arg1[%c768, %c0_22] : memref<904x128xf32, #tpu.memory_space<vmem>>, vector<128x128xf32>
    %cst_23 = arith.constant dense<0.000000e+00> : vector<16x128xf32>
    %51 = tpu.matmul %49, %50, %cst_23 {dimension_numbers = #tpu.dot_dimension_numbers<[1], [0], [0], [1], [0, 0, 1, 1], [], []>} : vector<16x128xf32>, vector<128x128xf32>, vector<16x128xf32> -> vector<16x128xf32>
    %52 = vector.broadcast %7 : vector<1x128xf32> to vector<16x128xf32>
    %53 = arith.addf %51, %52 : vector<16x128xf32>
    %c0_24 = arith.constant 0 : index
    %c0_25 = arith.constant 0 : index
    %54 = vector.load %arg2[%c0_24, %c0_25] : memref<8x768xf32, #tpu.memory_space<vmem>>, vector<8x128xf32>
    tpu.vector_store %arg2[%c0_24, %c0_25], %27 {strides = array<i32>} : memref<8x768xf32, #tpu.memory_space<vmem>>, vector<8x128xf32>,
    %c0_26 = arith.constant 0 : index
    %c128_27 = arith.constant 128 : index
    %55 = vector.load %arg2[%c0_26, %c128_27] : memref<8x768xf32, #tpu.memory_space<vmem>>, vector<8x128xf32>
    tpu.vector_store %arg2[%c0_26, %c128_27], %31 {strides = array<i32>} : memref<8x768xf32, #tpu.memory_space<vmem>>, vector<8x128xf32>,
    %c0_28 = arith.constant 0 : index
    %c256_29 = arith.constant 256 : index
    %56 = vector.load %arg2[%c0_28, %c256_29] : memref<8x768xf32, #tpu.memory_space<vmem>>, vector<8x128xf32>
    tpu.vector_store %arg2[%c0_28, %c256_29], %36 {strides = array<i32>} : memref<8x768xf32, #tpu.memory_space<vmem>>, vector<8x128xf32>,
    %57 = vector.extract_strided_slice %37 {offsets = [8, 0], sizes = [8, 128], strides = [1, 1]} : vector<16x128xf32> to vector<8x128xf32>
    %c0_30 = arith.constant 0 : index
    %c384_31 = arith.constant 384 : index
    %58 = vector.load %arg2[%c0_30, %c384_31] : memref<8x768xf32, #tpu.memory_space<vmem>>, vector<8x128xf32>
    tpu.vector_store %arg2[%c0_30, %c384_31], %57 {strides = array<i32>} : memref<8x768xf32, #tpu.memory_space<vmem>>, vector<8x128xf32>,
    %59 = vector.extract_strided_slice %53 {offsets = [0, 0], sizes = [8, 128], strides = [1, 1]} : vector<16x128xf32> to vector<8x128xf32>
    %c0_32 = arith.constant 0 : index
    %c512_33 = arith.constant 512 : index
    %60 = vector.load %arg2[%c0_32, %c512_33] : memref<8x768xf32, #tpu.memory_space<vmem>>, vector<8x128xf32>
    tpu.vector_store %arg2[%c0_32, %c512_33], %59 {strides = array<i32>} : memref<8x768xf32, #tpu.memory_space<vmem>>, vector<8x128xf32>,
    %61 = vector.extract_strided_slice %53 {offsets = [8, 0], sizes = [8, 128], strides = [1, 1]} : vector<16x128xf32> to vector<8x128xf32>
    %c0_34 = arith.constant 0 : index
    %c640_35 = arith.constant 640 : index
    %62 = vector.load %arg2[%c0_34, %c640_35] : memref<8x768xf32, #tpu.memory_space<vmem>>, vector<8x128xf32>
    tpu.vector_store %arg2[%c0_34, %c640_35], %61 {strides = array<i32>} : memref<8x768xf32, #tpu.memory_space<vmem>>, vector<8x128xf32>,
    return
  }
}

</mosaic_0001>

<llo_original>
// kernel: tpu_custom_call.1
$region0: #{tpu_custom_call.1}
  #allocation0 [shape = 'u32[]', space=smem, size = 0x4, offset = 0x4, fixed_abs, tag = 'smem constant byte address 0x4 - core index']
  #allocation1 [shape = 'u32[144,128]{1,0:T(1,128)}', space=vmem, size = 0x12000, scoped, tag = 'internal scratch']
  %s0 = inlined_call_operand.hbm [shape: f32[32,128], index: 0, kind: input, shape index: {}]
  %s1 = inlined_call_operand.hbm [shape: f32[904,128], index: 1, kind: input, shape index: {}]
  %s2 = inlined_call_operand.hbm [shape: f32[8,768], index: 2, kind: output, shape index: {}]
  %s3 = sld [smem:[#allocation0]]
  $region26: #{tpu_custom_call.1} parent=0
    _
  %s5 = ssub.s32 1, %s3
  %s6 = scalar_select 0, %s5, %s3
  $region1: #{tpu_custom_call.1} parent=0
    #allocation2 [shape = 'u8[16384]{0}', space=vmem, size = 0x4000, scoped, tag = 'input window, operand 0, single buffered']
    #allocation3 [shape = 's32[1]{0}', space=sflag, size = 0x4, scoped, tag = 'scoped memory for tpu_custom_call.1']
    #allocation4 [shape = 's32[1]{0}', space=sflag, size = 0x4, scoped, tag = 'scoped memory for tpu_custom_call.1']
    #allocation5 [shape = 'u8[462848]{0}', space=vmem, size = 0x71000, scoped, tag = 'input window, operand 1, single buffered']
    #allocation6 [shape = 's32[1]{0}', space=sflag, size = 0x4, scoped, tag = 'scoped memory for tpu_custom_call.1']
    #allocation7 [shape = 'u8[24576]{0}', space=vmem, size = 0x6000, scoped, tag = 'output window, operand 0, single buffered']
    %7 = vsyncpa [#allocation3], 0
    %8 = vsyncpa [#allocation6], 0
    %9 = vsyncpa [#allocation4], 0
    // Predicated region
    $region2: #{tpu_custom_call.1} parent=1 // pred_check
      _
    $region3: #{tpu_custom_call.1} parent=1 // pred_check_branch
      %11 = sbr.rel (0) target = $region5
    $region4: #{tpu_custom_call.1} parent=1 // pred_region
      %s13 = ssub.s32 512, 512
      %14 = vsyncadd [#allocation3], %s13
      %s15 = sshll.u32 [#allocation2], 4
      %s16 = int_to_ptr.vmem [resolvable:$true] %s15
      %21 = dma.hbm_to_vmem [thread:$0]  %s0, 512, %s16, [#allocation3], 128, 128, 8
    $region5: #{tpu_custom_call.1} parent=1 // pred_fallthru
      _
    // Predicated region
    $region6: #{tpu_custom_call.1} parent=1 // pred_check
      _
    $region7: #{tpu_custom_call.1} parent=1 // pred_check_branch
      %23 = sbr.rel (0) target = $region9
    $region8: #{tpu_custom_call.1} parent=1 // pred_region
      %s25 = ssub.s32 14464, 14464
      %26 = vsyncadd [#allocation6], %s25
      %s27 = sshll.u32 [#allocation5], 4
      %s28 = int_to_ptr.vmem [resolvable:$true] %s27
      %33 = dma.hbm_to_vmem [thread:$0]  %s1, 14464, %s28, [#allocation6], 128, 128, 8
    $region9: #{tpu_custom_call.1} parent=1 // pred_fallthru
      _
    // Predicated region
    $region10: #{tpu_custom_call.1} parent=1 // pred_check
      _
    $region11: #{tpu_custom_call.1} parent=1 // pred_check_branch
      %35 = sbr.rel (0) target = $region13
    $region12: #{tpu_custom_call.1} parent=1 // pred_region
      %36 = dma.done [#allocation3], 512
    $region13: #{tpu_custom_call.1} parent=1 // pred_fallthru
      _
    // Predicated region
    $region14: #{tpu_custom_call.1} parent=1 // pred_check
      _
    $region15: #{tpu_custom_call.1} parent=1 // pred_check_branch
      %38 = sbr.rel (0) target = $region17
    $region16: #{tpu_custom_call.1} parent=1 // pred_region
      %39 = dma.done [#allocation6], 14464
    $region17: #{tpu_custom_call.1} parent=1 // pred_fallthru
      _
    %v40 = vld [vmem:[#allocation5 + $0x380] sm:$0xff]
    %v41 = vld [vmem:[#allocation2] sm:$0xff]
    %v42 = vld [vmem:[#allocation2 + $0x8] sm:$0xff]
    %v43 = vld [vmem:[#allocation2 + $0x10] sm:$0xff]
    %v44 = vld [vmem:[#allocation2 + $0x18] sm:$0xff]
    %v45 = vld [vmem:[#allocation5] sm:$0xff]
    %v46 = vld [vmem:[#allocation5 + $0x8] sm:$0xff]
    %v47 = vld [vmem:[#allocation5 + $0x10] sm:$0xff]
    %v48 = vld [vmem:[#allocation5 + $0x18] sm:$0xff]
    %v49 = vld [vmem:[#allocation5 + $0x20] sm:$0xff]
    %v50 = vld [vmem:[#allocation5 + $0x28] sm:$0xff]
    %v51 = vld [vmem:[#allocation5 + $0x30] sm:$0xff]
    %v52 = vld [vmem:[#allocation5 + $0x38] sm:$0xff]
    %v53 = vld [vmem:[#allocation5 + $0x40] sm:$0xff]
    %v54 = vld [vmem:[#allocation5 + $0x48] sm:$0xff]
    %v55 = vld [vmem:[#allocation5 + $0x50] sm:$0xff]
    %v56 = vld [vmem:[#allocation5 + $0x58] sm:$0xff]
    %v57 = vld [vmem:[#allocation5 + $0x60] sm:$0xff]
    %v58 = vld [vmem:[#allocation5 + $0x68] sm:$0xff]
    %v59 = vld [vmem:[#allocation5 + $0x70] sm:$0xff]
    %v60 = vld [vmem:[#allocation5 + $0x78] sm:$0xff]
    %v61 = vlaneseq
    %v62 = vshrl.u32 %v61, 7
    %v63 = vsub.s32 0, %v62
    %v64 = vrot.slane %v40, %v63
    %65 = vmatprep.subr.mxu0 0.0
    %66 = vmatpush1.msra.mxu0 %v60
    %67 = vmatprep.subr.mxu0 0.0
    %68 = vmatpush1.msra.mxu0 %v59
    %69 = vmatprep.subr.mxu0 0.0
    %70 = vmatpush1.msra.mxu0 %v58
    %71 = vmatprep.subr.mxu0 0.0
    %72 = vmatpush1.msra.mxu0 %v57
    %73 = vmatprep.subr.mxu0 0.0
    %74 = vmatpush1.msra.mxu0 %v56
    %75 = vmatprep.subr.mxu0 0.0
    %76 = vmatpush1.msra.mxu0 %v55
    %77 = vmatprep.subr.mxu0 0.0
    %78 = vmatpush1.msra.mxu0 %v54
    %79 = vmatprep.subr.mxu0 0.0
    %80 = vmatpush1.msra.mxu0 %v53
    %81 = vmatprep.subr.mxu0 0.0
    %82 = vmatpush1.msra.mxu0 %v52
    %83 = vmatprep.subr.mxu0 0.0
    %84 = vmatpush1.msra.mxu0 %v51
    %85 = vmatprep.subr.mxu0 0.0
    %86 = vmatpush1.msra.mxu0 %v50
    %87 = vmatprep.subr.mxu0 0.0
    %88 = vmatpush1.msra.mxu0 %v49
    %89 = vmatprep.subr.mxu0 0.0
    %90 = vmatpush1.msra.mxu0 %v48
    %91 = vmatprep.subr.mxu0 0.0
    %92 = vmatpush1.msra.mxu0 %v47
    %93 = vmatprep.subr.mxu0 0.0
    %94 = vmatpush1.msra.mxu0 %v46
    %95 = vmatprep.subr.mxu0 0.0
    %96 = vmatpush1.msra.mxu0 %v45
    %97 = vmatprep.subr.mxu0 0.0
    %98 = vmatpush2.msra.mxu0 0.0
    %99 = vmatprep.subr.mxu0 0.0
    %100 = vmatpush2.msra.mxu0 0.0
    %101 = vmatprep.subr.mxu0 0.0
    %102 = vmatpush2.msra.mxu0 0.0
    %103 = vmatprep.subr.mxu0 0.0
    %104 = vmatpush2.msra.mxu0 0.0
    %105 = vmatprep.subr.mxu0 0.0
    %106 = vmatpush2.msra.mxu0 0.0
    %107 = vmatprep.subr.mxu0 0.0
    %108 = vmatpush2.msra.mxu0 0.0
    %109 = vmatprep.subr.mxu0 0.0
    %110 = vmatpush2.msra.mxu0 0.0
    %111 = vmatprep.subr.mxu0 0.0
    %112 = vmatpush2.msra.mxu0 0.0
    %113 = vmatprep.subr.mxu0 0.0
    %114 = vmatpush2.msra.mxu0 0.0
    %115 = vmatprep.subr.mxu0 0.0
    %116 = vmatpush2.msra.mxu0 0.0
    %117 = vmatprep.subr.mxu0 0.0
    %118 = vmatpush2.msra.mxu0 0.0
    %119 = vmatprep.subr.mxu0 0.0
    %120 = vmatpush2.msra.mxu0 0.0
    %121 = vmatprep.subr.mxu0 0.0
    %122 = vmatpush2.msra.mxu0 0.0
    %123 = vmatprep.subr.mxu0 0.0
    %124 = vmatpush2.msra.mxu0 0.0
    %125 = vmatprep.subr.mxu0 0.0
    %126 = vmatpush2.msra.mxu0 0.0
    %127 = vmatprep.subr.mxu0 0.0
    %128 = vmatpush2.msra.mxu0 0.0
    %129 = vmatprep.mubr.f32.mxu0 0.0
    %130 = vmatmul.mubr.f32.gmra.mxu0 %v41
    %v131 = vpop.f32.mrf.mxu0
    %v132 = vadd.f32 %v64, %v131
    %v133 = vpop.f32.mrf.mxu0
    %134 = vdwg.mxu0
    %v135 = vmax.f32 %v132, 0.0
    %v136 = vld [vmem:[#allocation5 + $0x80] sm:$0xff]
    %v137 = vld [vmem:[#allocation5 + $0x88] sm:$0xff]
    %v138 = vld [vmem:[#allocation5 + $0x90] sm:$0xff]
    %v139 = vld [vmem:[#allocation5 + $0x98] sm:$0xff]
    %v140 = vld [vmem:[#allocation5 + $0xa0] sm:$0xff]
    %v141 = vld [vmem:[#allocation5 + $0xa8] sm:$0xff]
    %v142 = vld [vmem:[#allocation5 + $0xb0] sm:$0xff]
    %v143 = vld [vmem:[#allocation5 + $0xb8] sm:$0xff]
    %v144 = vld [vmem:[#allocation5 + $0xc0] sm:$0xff]
    %v145 = vld [vmem:[#allocation5 + $0xc8] sm:$0xff]
    %v146 = vld [vmem:[#allocation5 + $0xd0] sm:$0xff]
    %v147 = vld [vmem:[#allocation5 + $0xd8] sm:$0xff]
    %v148 = vld [vmem:[#allocation5 + $0xe0] sm:$0xff]
    %v149 = vld [vmem:[#allocation5 + $0xe8] sm:$0xff]
    %v150 = vld [vmem:[#allocation5 + $0xf0] sm:$0xff]
    %v151 = vld [vmem:[#allocation5 + $0xf8] sm:$0xff]
    %v152 = vlaneseq
    %v153 = vshrl.u32 %v152, 7
    %v154 = vsub.s32 1, %v153
    %v155 = vrot.slane %v40, %v154
    %156 = vmatprep.subr.mxu0 0.0
    %157 = vmatpush1.msra.mxu0 %v151
    %158 = vmatprep.subr.mxu0 0.0
    %159 = vmatpush1.msra.mxu0 %v150
    %160 = vmatprep.subr.mxu0 0.0
    %161 = vmatpush1.msra.mxu0 %v149
    %162 = vmatprep.subr.mxu0 0.0
    %163 = vmatpush1.msra.mxu0 %v148
    %164 = vmatprep.subr.mxu0 0.0
    %165 = vmatpush1.msra.mxu0 %v147
    %166 = vmatprep.subr.mxu0 0.0
    %167 = vmatpush1.msra.mxu0 %v146
    %168 = vmatprep.subr.mxu0 0.0
    %169 = vmatpush1.msra.mxu0 %v145
    %170 = vmatprep.subr.mxu0 0.0
    %171 = vmatpush1.msra.mxu0 %v144
    %172 = vmatprep.subr.mxu0 0.0
    %173 = vmatpush1.msra.mxu0 %v143
    %174 = vmatprep.subr.mxu0 0.0
    %175 = vmatpush1.msra.mxu0 %v142
    %176 = vmatprep.subr.mxu0 0.0
    %177 = vmatpush1.msra.mxu0 %v141
    %178 = vmatprep.subr.mxu0 0.0
    %179 = vmatpush1.msra.mxu0 %v140
    %180 = vmatprep.subr.mxu0 0.0
    %181 = vmatpush1.msra.mxu0 %v139
    %182 = vmatprep.subr.mxu0 0.0
    %183 = vmatpush1.msra.mxu0 %v138
    %184 = vmatprep.subr.mxu0 0.0
    %185 = vmatpush1.msra.mxu0 %v137
    %186 = vmatprep.subr.mxu0 0.0
    %187 = vmatpush1.msra.mxu0 %v136
    %188 = vmatprep.subr.mxu0 0.0
    %189 = vmatpush2.msra.mxu0 0.0
    %190 = vmatprep.subr.mxu0 0.0
    %191 = vmatpush2.msra.mxu0 0.0
    %192 = vmatprep.subr.mxu0 0.0
    %193 = vmatpush2.msra.mxu0 0.0
    %194 = vmatprep.subr.mxu0 0.0
    %195 = vmatpush2.msra.mxu0 0.0
    %196 = vmatprep.subr.mxu0 0.0
    %197 = vmatpush2.msra.mxu0 0.0
    %198 = vmatprep.subr.mxu0 0.0
    %199 = vmatpush2.msra.mxu0 0.0
    %200 = vmatprep.subr.mxu0 0.0
    %201 = vmatpush2.msra.mxu0 0.0
    %202 = vmatprep.subr.mxu0 0.0
    %203 = vmatpush2.msra.mxu0 0.0
    %204 = vmatprep.subr.mxu0 0.0
    %205 = vmatpush2.msra.mxu0 0.0
    %206 = vmatprep.subr.mxu0 0.0
    %207 = vmatpush2.msra.mxu0 0.0
    %208 = vmatprep.subr.mxu0 0.0
    %209 = vmatpush2.msra.mxu0 0.0
    %210 = vmatprep.subr.mxu0 0.0
    %211 = vmatpush2.msra.mxu0 0.0
    %212 = vmatprep.subr.mxu0 0.0
    %213 = vmatpush2.msra.mxu0 0.0
    %214 = vmatprep.subr.mxu0 0.0
    %215 = vmatpush2.msra.mxu0 0.0
    %216 = vmatprep.subr.mxu0 0.0
    %217 = vmatpush2.msra.mxu0 0.0
    %218 = vmatprep.subr.mxu0 0.0
    %219 = vmatpush2.msra.mxu0 0.0
    %220 = vmatprep.mubr.f32.mxu0 0.0
    %221 = vmatmul.mubr.f32.gmra.mxu0 %v135
    %v222 = vpop.f32.mrf.mxu0
    %v223 = vadd.f32 %v155, %v222
    %v224 = vpop.f32.mrf.mxu0
    %225 = vdwg.mxu0
    %v226 = vmax.f32 %v223, 0.0
    %v227 = vld [vmem:[#allocation5 + $0x100] sm:$0xff]
    %v228 = vld [vmem:[#allocation5 + $0x108] sm:$0xff]
    %v229 = vld [vmem:[#allocation5 + $0x110] sm:$0xff]
    %v230 = vld [vmem:[#allocation5 + $0x118] sm:$0xff]
    %v231 = vld [vmem:[#allocation5 + $0x120] sm:$0xff]
    %v232 = vld [vmem:[#allocation5 + $0x128] sm:$0xff]
    %v233 = vld [vmem:[#allocation5 + $0x130] sm:$0xff]
    %v234 = vld [vmem:[#allocation5 + $0x138] sm:$0xff]
    %v235 = vld [vmem:[#allocation5 + $0x140] sm:$0xff]
    %v236 = vld [vmem:[#allocation5 + $0x148] sm:$0xff]
    %v237 = vld [vmem:[#allocation5 + $0x150] sm:$0xff]
    %v238 = vld [vmem:[#allocation5 + $0x158] sm:$0xff]
    %v239 = vld [vmem:[#allocation5 + $0x160] sm:$0xff]
    %v240 = vld [vmem:[#allocation5 + $0x168] sm:$0xff]
    %v241 = vld [vmem:[#allocation5 + $0x170] sm:$0xff]
    %v242 = vld [vmem:[#allocation5 + $0x178] sm:$0xff]
    %v243 = vlaneseq
    %v244 = vshrl.u32 %v243, 7
    %v245 = vsub.s32 2, %v244
    %v246 = vrot.slane %v40, %v245
    %247 = vmatprep.subr.mxu0 0.0
    %248 = vmatpush1.msra.mxu0 %v242
    %249 = vmatprep.subr.mxu0 0.0
    %250 = vmatpush1.msra.mxu0 %v241
    %251 = vmatprep.subr.mxu0 0.0
    %252 = vmatpush1.msra.mxu0 %v240
    %253 = vmatprep.subr.mxu0 0.0
    %254 = vmatpush1.msra.mxu0 %v239
    %255 = vmatprep.subr.mxu0 0.0
    %256 = vmatpush1.msra.mxu0 %v238
    %257 = vmatprep.subr.mxu0 0.0
    %258 = vmatpush1.msra.mxu0 %v237
    %259 = vmatprep.subr.mxu0 0.0
    %260 = vmatpush1.msra.mxu0 %v236
    %261 = vmatprep.subr.mxu0 0.0
    %262 = vmatpush1.msra.mxu0 %v235
    %263 = vmatprep.subr.mxu0 0.0
    %264 = vmatpush1.msra.mxu0 %v234
    %265 = vmatprep.subr.mxu0 0.0
    %266 = vmatpush1.msra.mxu0 %v233
    %267 = vmatprep.subr.mxu0 0.0
    %268 = vmatpush1.msra.mxu0 %v232
    %269 = vmatprep.subr.mxu0 0.0
    %270 = vmatpush1.msra.mxu0 %v231
    %271 = vmatprep.subr.mxu0 0.0
    %272 = vmatpush1.msra.mxu0 %v230
    %273 = vmatprep.subr.mxu0 0.0
    %274 = vmatpush1.msra.mxu0 %v229
    %275 = vmatprep.subr.mxu0 0.0
    %276 = vmatpush1.msra.mxu0 %v228
    %277 = vmatprep.subr.mxu0 0.0
    %278 = vmatpush1.msra.mxu0 %v227
    %279 = vmatprep.subr.mxu0 0.0
    %280 = vmatpush2.msra.mxu0 0.0
    %281 = vmatprep.subr.mxu0 0.0
    %282 = vmatpush2.msra.mxu0 0.0
    %283 = vmatprep.subr.mxu0 0.0
    %284 = vmatpush2.msra.mxu0 0.0
    %285 = vmatprep.subr.mxu0 0.0
    %286 = vmatpush2.msra.mxu0 0.0
    %287 = vmatprep.subr.mxu0 0.0
    %288 = vmatpush2.msra.mxu0 0.0
    %289 = vmatprep.subr.mxu0 0.0
    %290 = vmatpush2.msra.mxu0 0.0
    %291 = vmatprep.subr.mxu0 0.0
    %292 = vmatpush2.msra.mxu0 0.0
    %293 = vmatprep.subr.mxu0 0.0
    %294 = vmatpush2.msra.mxu0 0.0
    %295 = vmatprep.subr.mxu0 0.0
    %296 = vmatpush2.msra.mxu0 0.0
    %297 = vmatprep.subr.mxu0 0.0
    %298 = vmatpush2.msra.mxu0 0.0
    %299 = vmatprep.subr.mxu0 0.0
    %300 = vmatpush2.msra.mxu0 0.0
    %301 = vmatprep.subr.mxu0 0.0
    %302 = vmatpush2.msra.mxu0 0.0
    %303 = vmatprep.subr.mxu0 0.0
    %304 = vmatpush2.msra.mxu0 0.0
    %305 = vmatprep.subr.mxu0 0.0
    %306 = vmatpush2.msra.mxu0 0.0
    %307 = vmatprep.subr.mxu0 0.0
    %308 = vmatpush2.msra.mxu0 0.0
    %309 = vmatprep.subr.mxu0 0.0
    %310 = vmatpush2.msra.mxu0 0.0
    %311 = vmatprep.mubr.f32.mxu0 0.0
    %312 = vmatmul.mubr.f32.gmra.mxu0 %v226
    %v313 = vpop.f32.mrf.mxu0
    %v314 = vadd.f32 %v246, %v313
    %v315 = vpop.f32.mrf.mxu0
    %316 = vdwg.mxu0
    %v317 = vld [vmem:[#allocation5 + $0x180] sm:$0xff]
    %v318 = vld [vmem:[#allocation5 + $0x188] sm:$0xff]
    %v319 = vld [vmem:[#allocation5 + $0x190] sm:$0xff]
    %v320 = vld [vmem:[#allocation5 + $0x198] sm:$0xff]
    %v321 = vld [vmem:[#allocation5 + $0x1a0] sm:$0xff]
    %v322 = vld [vmem:[#allocation5 + $0x1a8] sm:$0xff]
    %v323 = vld [vmem:[#allocation5 + $0x1b0] sm:$0xff]
    %v324 = vld [vmem:[#allocation5 + $0x1b8] sm:$0xff]
    %v325 = vld [vmem:[#allocation5 + $0x1c0] sm:$0xff]
    %v326 = vld [vmem:[#allocation5 + $0x1c8] sm:$0xff]
    %v327 = vld [vmem:[#allocation5 + $0x1d0] sm:$0xff]
    %v328 = vld [vmem:[#allocation5 + $0x1d8] sm:$0xff]
    %v329 = vld [vmem:[#allocation5 + $0x1e0] sm:$0xff]
    %v330 = vld [vmem:[#allocation5 + $0x1e8] sm:$0xff]
    %v331 = vld [vmem:[#allocation5 + $0x1f0] sm:$0xff]
    %v332 = vld [vmem:[#allocation5 + $0x1f8] sm:$0xff]
    %v333 = vlaneseq
    %v334 = vshrl.u32 %v333, 7
    %v335 = vsub.s32 3, %v334
    %v336 = vrot.slane %v40, %v335
    %337 = vmatprep.subr.mxu0 0.0
    %338 = vmatpush1.msra.mxu0 %v332
    %339 = vmatprep.subr.mxu0 0.0
    %340 = vmatpush1.msra.mxu0 %v331
    %341 = vmatprep.subr.mxu0 0.0
    %342 = vmatpush1.msra.mxu0 %v330
    %343 = vmatprep.subr.mxu0 0.0
    %344 = vmatpush1.msra.mxu0 %v329
    %345 = vmatprep.subr.mxu0 0.0
    %346 = vmatpush1.msra.mxu0 %v328
    %347 = vmatprep.subr.mxu0 0.0
    %348 = vmatpush1.msra.mxu0 %v327
    %349 = vmatprep.subr.mxu0 0.0
    %350 = vmatpush1.msra.mxu0 %v326
    %351 = vmatprep.subr.mxu0 0.0
    %352 = vmatpush1.msra.mxu0 %v325
    %353 = vmatprep.subr.mxu0 0.0
    %354 = vmatpush1.msra.mxu0 %v324
    %355 = vmatprep.subr.mxu0 0.0
    %356 = vmatpush1.msra.mxu0 %v323
    %357 = vmatprep.subr.mxu0 0.0
    %358 = vmatpush1.msra.mxu0 %v322
    %359 = vmatprep.subr.mxu0 0.0
    %360 = vmatpush1.msra.mxu0 %v321
    %361 = vmatprep.subr.mxu0 0.0
    %362 = vmatpush1.msra.mxu0 %v320
    %363 = vmatprep.subr.mxu0 0.0
    %364 = vmatpush1.msra.mxu0 %v319
    %365 = vmatprep.subr.mxu0 0.0
    %366 = vmatpush1.msra.mxu0 %v318
    %367 = vmatprep.subr.mxu0 0.0
    %368 = vmatpush1.msra.mxu0 %v317
    %369 = vmatprep.subr.mxu0 0.0
    %370 = vmatpush2.msra.mxu0 0.0
    %371 = vmatprep.subr.mxu0 0.0
    %372 = vmatpush2.msra.mxu0 0.0
    %373 = vmatprep.subr.mxu0 0.0
    %374 = vmatpush2.msra.mxu0 0.0
    %375 = vmatprep.subr.mxu0 0.0
    %376 = vmatpush2.msra.mxu0 0.0
    %377 = vmatprep.subr.mxu0 0.0
    %378 = vmatpush2.msra.mxu0 0.0
    %379 = vmatprep.subr.mxu0 0.0
    %380 = vmatpush2.msra.mxu0 0.0
    %381 = vmatprep.subr.mxu0 0.0
    %382 = vmatpush2.msra.mxu0 0.0
    %383 = vmatprep.subr.mxu0 0.0
    %384 = vmatpush2.msra.mxu0 0.0
    %385 = vmatprep.subr.mxu0 0.0
    %386 = vmatpush2.msra.mxu0 0.0
    %387 = vmatprep.subr.mxu0 0.0
    %388 = vmatpush2.msra.mxu0 0.0
    %389 = vmatprep.subr.mxu0 0.0
    %390 = vmatpush2.msra.mxu0 0.0
    %391 = vmatprep.subr.mxu0 0.0
    %392 = vmatpush2.msra.mxu0 0.0
    %393 = vmatprep.subr.mxu0 0.0
    %394 = vmatpush2.msra.mxu0 0.0
    %395 = vmatprep.subr.mxu0 0.0
    %396 = vmatpush2.msra.mxu0 0.0
    %397 = vmatprep.subr.mxu0 0.0
    %398 = vmatpush2.msra.mxu0 0.0
    %399 = vmatprep.subr.mxu0 0.0
    %400 = vmatpush2.msra.mxu0 0.0
    %401 = vmatprep.mubr.f32.mxu0 0.0
    %402 = vmatmul.mubr.f32.gmra.mxu0 %v226
    %v403 = vpop.f32.mrf.mxu0
    %v404 = vadd.f32 %v336, %v403
    %v405 = vpop.f32.mrf.mxu0
    %406 = vdwg.mxu0
    %v407 = vmul.f32 %v404, 0.5
    %v408 = vmul.f32 %v407, 1.442695
    %v409 = vpow.pop %v408
    %v410 = vmul.f32 %v42, %v409
    %v411 = vadd.f32 %v410, %v314
    %vm412 = vcmask 64512
    %v414 = vsel %vm412, %v43, 0
    %v417 = vsel %vm412, %v44, 0
    %419 = vmatprep.subr.mxu0 0.0
    %420 = vmatpush1.msra.mxu0 0.0
    %421 = vmatprep.subr.mxu0 0.0
    %422 = vmatpush1.msra.mxu0 0.0
    %423 = vmatprep.subr.mxu0 0.0
    %424 = vmatpush1.msra.mxu0 0.0
    %425 = vmatprep.subr.mxu0 0.0
    %426 = vmatpush1.msra.mxu0 0.0
    %427 = vmatprep.subr.mxu0 0.0
    %428 = vmatpush1.msra.mxu0 0.0
    %429 = vmatprep.subr.mxu0 0.0
    %430 = vmatpush1.msra.mxu0 0.0
    %431 = vmatprep.subr.mxu0 0.0
    %432 = vmatpush1.msra.mxu0 0.0
    %433 = vmatprep.subr.mxu0 0.0
    %434 = vmatpush1.msra.mxu0 0.0
    %435 = vmatprep.subr.mxu0 0.0
    %436 = vmatpush1.msra.mxu0 0.0
    %437 = vmatprep.subr.mxu0 0.0
    %438 = vmatpush1.msra.mxu0 0.0
    %439 = vmatprep.subr.mxu0 0.0
    %440 = vmatpush1.msra.mxu0 0.0
    %441 = vmatprep.subr.mxu0 0.0
    %442 = vmatpush1.msra.mxu0 0.0
    %443 = vmatprep.subr.mxu0 0.0
    %444 = vmatpush1.msra.mxu0 0.0
    %445 = vmatprep.subr.mxu0 0.0
    %446 = vmatpush1.msra.mxu0 0.0
    %447 = vmatprep.subr.mxu0 0.0
    %448 = vmatpush1.msra.mxu0 0.0
    %449 = vmatprep.subr.mxu0 0.0
    %450 = vmatpush1.msra.mxu0 %v411
    %451 = vmatprep.subr.mxu0 0.0
    %452 = vmatpush2.msra.mxu0 0.0
    %453 = vmatprep.subr.mxu0 0.0
    %454 = vmatpush2.msra.mxu0 0.0
    %455 = vmatprep.subr.mxu0 0.0
    %456 = vmatpush2.msra.mxu0 0.0
    %457 = vmatprep.subr.mxu0 0.0
    %458 = vmatpush2.msra.mxu0 0.0
    %459 = vmatprep.subr.mxu0 0.0
    %460 = vmatpush2.msra.mxu0 0.0
    %461 = vmatprep.subr.mxu0 0.0
    %462 = vmatpush2.msra.mxu0 0.0
    %463 = vmatprep.subr.mxu0 0.0
    %464 = vmatpush2.msra.mxu0 0.0
    %465 = vmatprep.subr.mxu0 0.0
    %466 = vmatpush2.msra.mxu0 0.0
    %467 = vmatprep.subr.mxu0 0.0
    %468 = vmatpush2.msra.mxu0 0.0
    %469 = vmatprep.subr.mxu0 0.0
    %470 = vmatpush2.msra.mxu0 0.0
    %471 = vmatprep.subr.mxu0 0.0
    %472 = vmatpush2.msra.mxu0 0.0
    %473 = vmatprep.subr.mxu0 0.0
    %474 = vmatpush2.msra.mxu0 0.0
    %475 = vmatprep.subr.mxu0 0.0
    %476 = vmatpush2.msra.mxu0 0.0
    %477 = vmatprep.subr.mxu0 0.0
    %478 = vmatpush2.msra.mxu0 0.0
    %479 = vmatprep.subr.mxu0 0.0
    %480 = vmatpush2.msra.mxu0 0.0
    %481 = vmatprep.subr.mxu0 0.0
    %482 = vmatpush2.msra.mxu0 0.0
    %483 = vmatprep.mubr.f32.mxu0 0.0
    %484 = vmatmul.mubr.f32.gmra.mxu0 %v414
    %v485 = vpop.f32.mrf.mxu0
    %v486 = vadd.f32 0.0, %v485
    %v487 = vpop.f32.mrf.mxu0
    %488 = vmatprep.mubr.f32.mxu0 0.0
    %489 = vmatmul.mubr.f32.gmra.mxu0 %v417
    %v490 = vpop.f32.mrf.mxu0
    %v491 = vadd.f32 0.0, %v490
    %v492 = vpop.f32.mrf.mxu0
    %493 = vdwg.mxu0
    %v494 = vld [vmem:[#allocation5 + $0x200] sm:$0xff]
    %v495 = vld [vmem:[#allocation5 + $0x208] sm:$0xff]
    %v496 = vld [vmem:[#allocation5 + $0x210] sm:$0xff]
    %v497 = vld [vmem:[#allocation5 + $0x218] sm:$0xff]
    %v498 = vld [vmem:[#allocation5 + $0x220] sm:$0xff]
    %v499 = vld [vmem:[#allocation5 + $0x228] sm:$0xff]
    %v500 = vld [vmem:[#allocation5 + $0x230] sm:$0xff]
    %v501 = vld [vmem:[#allocation5 + $0x238] sm:$0xff]
    %v502 = vld [vmem:[#allocation5 + $0x240] sm:$0xff]
    %v503 = vld [vmem:[#allocation5 + $0x248] sm:$0xff]
    %v504 = vld [vmem:[#allocation5 + $0x250] sm:$0xff]
    %v505 = vld [vmem:[#allocation5 + $0x258] sm:$0xff]
    %v506 = vld [vmem:[#allocation5 + $0x260] sm:$0xff]
    %v507 = vld [vmem:[#allocation5 + $0x268] sm:$0xff]
    %v508 = vld [vmem:[#allocation5 + $0x270] sm:$0xff]
    %v509 = vld [vmem:[#allocation5 + $0x278] sm:$0xff]
    %v510 = vlaneseq
    %v511 = vshrl.u32 %v510, 7
    %v512 = vsub.s32 4, %v511
    %v513 = vrot.slane %v40, %v512
    %514 = vmatprep.subr.mxu0 0.0
    %515 = vmatpush1.msra.mxu0 %v509
    %516 = vmatprep.subr.mxu0 0.0
    %517 = vmatpush1.msra.mxu0 %v508
    %518 = vmatprep.subr.mxu0 0.0
    %519 = vmatpush1.msra.mxu0 %v507
    %520 = vmatprep.subr.mxu0 0.0
    %521 = vmatpush1.msra.mxu0 %v506
    %522 = vmatprep.subr.mxu0 0.0
    %523 = vmatpush1.msra.mxu0 %v505
    %524 = vmatprep.subr.mxu0 0.0
    %525 = vmatpush1.msra.mxu0 %v504
    %526 = vmatprep.subr.mxu0 0.0
    %527 = vmatpush1.msra.mxu0 %v503
    %528 = vmatprep.subr.mxu0 0.0
    %529 = vmatpush1.msra.mxu0 %v502
    %530 = vmatprep.subr.mxu0 0.0
    %531 = vmatpush1.msra.mxu0 %v501
    %532 = vmatprep.subr.mxu0 0.0
    %533 = vmatpush1.msra.mxu0 %v500
    %534 = vmatprep.subr.mxu0 0.0
    %535 = vmatpush1.msra.mxu0 %v499
    %536 = vmatprep.subr.mxu0 0.0
    %537 = vmatpush1.msra.mxu0 %v498
    %538 = vmatprep.subr.mxu0 0.0
    %539 = vmatpush1.msra.mxu0 %v497
    %540 = vmatprep.subr.mxu0 0.0
    %541 = vmatpush1.msra.mxu0 %v496
    %542 = vmatprep.subr.mxu0 0.0
    %543 = vmatpush1.msra.mxu0 %v495
    %544 = vmatprep.subr.mxu0 0.0
    %545 = vmatpush1.msra.mxu0 %v494
    %546 = vmatprep.subr.mxu0 0.0
    %547 = vmatpush2.msra.mxu0 0.0
    %548 = vmatprep.subr.mxu0 0.0
    %549 = vmatpush2.msra.mxu0 0.0
    %550 = vmatprep.subr.mxu0 0.0
    %551 = vmatpush2.msra.mxu0 0.0
    %552 = vmatprep.subr.mxu0 0.0
    %553 = vmatpush2.msra.mxu0 0.0
    %554 = vmatprep.subr.mxu0 0.0
    %555 = vmatpush2.msra.mxu0 0.0
    %556 = vmatprep.subr.mxu0 0.0
    %557 = vmatpush2.msra.mxu0 0.0
    %558 = vmatprep.subr.mxu0 0.0
    %559 = vmatpush2.msra.mxu0 0.0
    %560 = vmatprep.subr.mxu0 0.0
    %561 = vmatpush2.msra.mxu0 0.0
    %562 = vmatprep.subr.mxu0 0.0
    %563 = vmatpush2.msra.mxu0 0.0
    %564 = vmatprep.subr.mxu0 0.0
    %565 = vmatpush2.msra.mxu0 0.0
    %566 = vmatprep.subr.mxu0 0.0
    %567 = vmatpush2.msra.mxu0 0.0
    %568 = vmatprep.subr.mxu0 0.0
    %569 = vmatpush2.msra.mxu0 0.0
    %570 = vmatprep.subr.mxu0 0.0
    %571 = vmatpush2.msra.mxu0 0.0
    %572 = vmatprep.subr.mxu0 0.0
    %573 = vmatpush2.msra.mxu0 0.0
    %574 = vmatprep.subr.mxu0 0.0
    %575 = vmatpush2.msra.mxu0 0.0
    %576 = vmatprep.subr.mxu0 0.0
    %577 = vmatpush2.msra.mxu0 0.0
    %578 = vmatprep.mubr.f32.mxu0 0.0
    %579 = vmatmul.mubr.f32.gmra.mxu0 %v486
    %v580 = vpop.f32.mrf.mxu0
    %v581 = vadd.f32 %v513, %v580
    %v582 = vpop.f32.mrf.mxu0
    %583 = vmatprep.mubr.f32.mxu0 0.0
    %584 = vmatmul.mubr.f32.gmra.mxu0 %v491
    %v585 = vpop.f32.mrf.mxu0
    %v586 = vadd.f32 %v513, %v585
    %v587 = vpop.f32.mrf.mxu0
    %588 = vdwg.mxu0
    %v589 = vmax.f32 %v581, 0.0
    %v590 = vmax.f32 %v586, 0.0
    %v591 = vld [vmem:[#allocation5 + $0x280] sm:$0xff]
    %v592 = vld [vmem:[#allocation5 + $0x288] sm:$0xff]
    %v593 = vld [vmem:[#allocation5 + $0x290] sm:$0xff]
    %v594 = vld [vmem:[#allocation5 + $0x298] sm:$0xff]
    %v595 = vld [vmem:[#allocation5 + $0x2a0] sm:$0xff]
    %v596 = vld [vmem:[#allocation5 + $0x2a8] sm:$0xff]
    %v597 = vld [vmem:[#allocation5 + $0x2b0] sm:$0xff]
    %v598 = vld [vmem:[#allocation5 + $0x2b8] sm:$0xff]
    %v599 = vld [vmem:[#allocation5 + $0x2c0] sm:$0xff]
    %v600 = vld [vmem:[#allocation5 + $0x2c8] sm:$0xff]
    %v601 = vld [vmem:[#allocation5 + $0x2d0] sm:$0xff]
    %v602 = vld [vmem:[#allocation5 + $0x2d8] sm:$0xff]
    %v603 = vld [vmem:[#allocation5 + $0x2e0] sm:$0xff]
    %v604 = vld [vmem:[#allocation5 + $0x2e8] sm:$0xff]
    %v605 = vld [vmem:[#allocation5 + $0x2f0] sm:$0xff]
    %v606 = vld [vmem:[#allocation5 + $0x2f8] sm:$0xff]
    %v607 = vlaneseq
    %v608 = vshrl.u32 %v607, 7
    %v609 = vsub.s32 5, %v608
    %v610 = vrot.slane %v40, %v609
    %611 = vmatprep.subr.mxu0 0.0
    %612 = vmatpush1.msra.mxu0 %v606
    %613 = vmatprep.subr.mxu0 0.0
    %614 = vmatpush1.msra.mxu0 %v605
    %615 = vmatprep.subr.mxu0 0.0
    %616 = vmatpush1.msra.mxu0 %v604
    %617 = vmatprep.subr.mxu0 0.0
    %618 = vmatpush1.msra.mxu0 %v603
    %619 = vmatprep.subr.mxu0 0.0
    %620 = vmatpush1.msra.mxu0 %v602
    %621 = vmatprep.subr.mxu0 0.0
    %622 = vmatpush1.msra.mxu0 %v601
    %623 = vmatprep.subr.mxu0 0.0
    %624 = vmatpush1.msra.mxu0 %v600
    %625 = vmatprep.subr.mxu0 0.0
    %626 = vmatpush1.msra.mxu0 %v599
    %627 = vmatprep.subr.mxu0 0.0
    %628 = vmatpush1.msra.mxu0 %v598
    %629 = vmatprep.subr.mxu0 0.0
    %630 = vmatpush1.msra.mxu0 %v597
    %631 = vmatprep.subr.mxu0 0.0
    %632 = vmatpush1.msra.mxu0 %v596
    %633 = vmatprep.subr.mxu0 0.0
    %634 = vmatpush1.msra.mxu0 %v595
    %635 = vmatprep.subr.mxu0 0.0
    %636 = vmatpush1.msra.mxu0 %v594
    %637 = vmatprep.subr.mxu0 0.0
    %638 = vmatpush1.msra.mxu0 %v593
    %639 = vmatprep.subr.mxu0 0.0
    %640 = vmatpush1.msra.mxu0 %v592
    %641 = vmatprep.subr.mxu0 0.0
    %642 = vmatpush1.msra.mxu0 %v591
    %643 = vmatprep.subr.mxu0 0.0
    %644 = vmatpush2.msra.mxu0 0.0
    %645 = vmatprep.subr.mxu0 0.0
    %646 = vmatpush2.msra.mxu0 0.0
    %647 = vmatprep.subr.mxu0 0.0
    %648 = vmatpush2.msra.mxu0 0.0
    %649 = vmatprep.subr.mxu0 0.0
    %650 = vmatpush2.msra.mxu0 0.0
    %651 = vmatprep.subr.mxu0 0.0
    %652 = vmatpush2.msra.mxu0 0.0
    %653 = vmatprep.subr.mxu0 0.0
    %654 = vmatpush2.msra.mxu0 0.0
    %655 = vmatprep.subr.mxu0 0.0
    %656 = vmatpush2.msra.mxu0 0.0
    %657 = vmatprep.subr.mxu0 0.0
    %658 = vmatpush2.msra.mxu0 0.0
    %659 = vmatprep.subr.mxu0 0.0
    %660 = vmatpush2.msra.mxu0 0.0
    %661 = vmatprep.subr.mxu0 0.0
    %662 = vmatpush2.msra.mxu0 0.0
    %663 = vmatprep.subr.mxu0 0.0
    %664 = vmatpush2.msra.mxu0 0.0
    %665 = vmatprep.subr.mxu0 0.0
    %666 = vmatpush2.msra.mxu0 0.0
    %667 = vmatprep.subr.mxu0 0.0
    %668 = vmatpush2.msra.mxu0 0.0
    %669 = vmatprep.subr.mxu0 0.0
    %670 = vmatpush2.msra.mxu0 0.0
    %671 = vmatprep.subr.mxu0 0.0
    %672 = vmatpush2.msra.mxu0 0.0
    %673 = vmatprep.subr.mxu0 0.0
    %674 = vmatpush2.msra.mxu0 0.0
    %675 = vmatprep.mubr.f32.mxu0 0.0
    %676 = vmatmul.mubr.f32.gmra.mxu0 %v589
    %v677 = vpop.f32.mrf.mxu0
    %v678 = vadd.f32 %v610, %v677
    %v679 = vpop.f32.mrf.mxu0
    %680 = vmatprep.mubr.f32.mxu0 0.0
    %681 = vmatmul.mubr.f32.gmra.mxu0 %v590
    %v682 = vpop.f32.mrf.mxu0
    %v683 = vadd.f32 %v610, %v682
    %v684 = vpop.f32.mrf.mxu0
    %685 = vdwg.mxu0
    %v686 = vmax.f32 %v678, 0.0
    %v687 = vmax.f32 %v683, 0.0
    %v688 = vld [vmem:[#allocation5 + $0x300] sm:$0xff]
    %v689 = vld [vmem:[#allocation5 + $0x308] sm:$0xff]
    %v690 = vld [vmem:[#allocation5 + $0x310] sm:$0xff]
    %v691 = vld [vmem:[#allocation5 + $0x318] sm:$0xff]
    %v692 = vld [vmem:[#allocation5 + $0x320] sm:$0xff]
    %v693 = vld [vmem:[#allocation5 + $0x328] sm:$0xff]
    %v694 = vld [vmem:[#allocation5 + $0x330] sm:$0xff]
    %v695 = vld [vmem:[#allocation5 + $0x338] sm:$0xff]
    %v696 = vld [vmem:[#allocation5 + $0x340] sm:$0xff]
    %v697 = vld [vmem:[#allocation5 + $0x348] sm:$0xff]
    %v698 = vld [vmem:[#allocation5 + $0x350] sm:$0xff]
    %v699 = vld [vmem:[#allocation5 + $0x358] sm:$0xff]
    %v700 = vld [vmem:[#allocation5 + $0x360] sm:$0xff]
    %v701 = vld [vmem:[#allocation5 + $0x368] sm:$0xff]
    %v702 = vld [vmem:[#allocation5 + $0x370] sm:$0xff]
    %v703 = vld [vmem:[#allocation5 + $0x378] sm:$0xff]
    %v704 = vlaneseq
    %v705 = vshrl.u32 %v704, 7
    %v706 = vsub.s32 6, %v705
    %v707 = vrot.slane %v40, %v706
    %708 = vmatprep.subr.mxu0 0.0
    %709 = vmatpush1.msra.mxu0 %v703
    %710 = vmatprep.subr.mxu0 0.0
    %711 = vmatpush1.msra.mxu0 %v702
    %712 = vmatprep.subr.mxu0 0.0
    %713 = vmatpush1.msra.mxu0 %v701
    %714 = vmatprep.subr.mxu0 0.0
    %715 = vmatpush1.msra.mxu0 %v700
    %716 = vmatprep.subr.mxu0 0.0
    %717 = vmatpush1.msra.mxu0 %v699
    %718 = vmatprep.subr.mxu0 0.0
    %719 = vmatpush1.msra.mxu0 %v698
    %720 = vmatprep.subr.mxu0 0.0
    %721 = vmatpush1.msra.mxu0 %v697
    %722 = vmatprep.subr.mxu0 0.0
    %723 = vmatpush1.msra.mxu0 %v696
    %724 = vmatprep.subr.mxu0 0.0
    %725 = vmatpush1.msra.mxu0 %v695
    %726 = vmatprep.subr.mxu0 0.0
    %727 = vmatpush1.msra.mxu0 %v694
    %728 = vmatprep.subr.mxu0 0.0
    %729 = vmatpush1.msra.mxu0 %v693
    %730 = vmatprep.subr.mxu0 0.0
    %731 = vmatpush1.msra.mxu0 %v692
    %732 = vmatprep.subr.mxu0 0.0
    %733 = vmatpush1.msra.mxu0 %v691
    %734 = vmatprep.subr.mxu0 0.0
    %735 = vmatpush1.msra.mxu0 %v690
    %736 = vmatprep.subr.mxu0 0.0
    %737 = vmatpush1.msra.mxu0 %v689
    %738 = vmatprep.subr.mxu0 0.0
    %739 = vmatpush1.msra.mxu0 %v688
    %740 = vmatprep.subr.mxu0 0.0
    %741 = vmatpush2.msra.mxu0 0.0
    %742 = vmatprep.subr.mxu0 0.0
    %743 = vmatpush2.msra.mxu0 0.0
    %744 = vmatprep.subr.mxu0 0.0
    %745 = vmatpush2.msra.mxu0 0.0
    %746 = vmatprep.subr.mxu0 0.0
    %747 = vmatpush2.msra.mxu0 0.0
    %748 = vmatprep.subr.mxu0 0.0
    %749 = vmatpush2.msra.mxu0 0.0
    %750 = vmatprep.subr.mxu0 0.0
    %751 = vmatpush2.msra.mxu0 0.0
    %752 = vmatprep.subr.mxu0 0.0
    %753 = vmatpush2.msra.mxu0 0.0
    %754 = vmatprep.subr.mxu0 0.0
    %755 = vmatpush2.msra.mxu0 0.0
    %756 = vmatprep.subr.mxu0 0.0
    %757 = vmatpush2.msra.mxu0 0.0
    %758 = vmatprep.subr.mxu0 0.0
    %759 = vmatpush2.msra.mxu0 0.0
    %760 = vmatprep.subr.mxu0 0.0
    %761 = vmatpush2.msra.mxu0 0.0
    %762 = vmatprep.subr.mxu0 0.0
    %763 = vmatpush2.msra.mxu0 0.0
    %764 = vmatprep.subr.mxu0 0.0
    %765 = vmatpush2.msra.mxu0 0.0
    %766 = vmatprep.subr.mxu0 0.0
    %767 = vmatpush2.msra.mxu0 0.0
    %768 = vmatprep.subr.mxu0 0.0
    %769 = vmatpush2.msra.mxu0 0.0
    %770 = vmatprep.subr.mxu0 0.0
    %771 = vmatpush2.msra.mxu0 0.0
    %772 = vmatprep.mubr.f32.mxu0 0.0
    %773 = vmatmul.mubr.f32.gmra.mxu0 %v686
    %v774 = vpop.f32.mrf.mxu0
    %v775 = vadd.f32 %v707, %v774
    %v776 = vpop.f32.mrf.mxu0
    %777 = vmatprep.mubr.f32.mxu0 0.0
    %778 = vmatmul.mubr.f32.gmra.mxu0 %v687
    %v779 = vpop.f32.mrf.mxu0
    %v780 = vadd.f32 %v707, %v779
    %v781 = vpop.f32.mrf.mxu0
    %782 = vdwg.mxu0
    %783 = vst [vmem:[#allocation7] sm:$0xff] %v314
    %784 = vst [vmem:[#allocation7 + $0x8] sm:$0xff] %v404
    %785 = vst [vmem:[#allocation7 + $0x10] sm:$0xff] %v411
    %786 = vst [vmem:[#allocation7 + $0x18] sm:$0xff] %v491
    %787 = vst [vmem:[#allocation7 + $0x20] sm:$0xff] %v775
    %788 = vst [vmem:[#allocation7 + $0x28] sm:$0xff] %v780
    // Predicated region
    $region18: #{tpu_custom_call.1} parent=1 // pred_check
      _
    $region19: #{tpu_custom_call.1} parent=1 // pred_check_branch
      %790 = sbr.rel (0) target = $region21
    $region20: #{tpu_custom_call.1} parent=1 // pred_region
      %s792 = ssub.s32 768, 768
      %793 = vsyncadd [#allocation4], %s792
      %s795 = sshll.u32 [#allocation7], 4
      %s796 = int_to_ptr.vmem [resolvable:$true] %s795
      %798 = dma.vmem_to_hbm [thread:$0]  %s796, 768, %s2, [#allocation4]
    $region21: #{tpu_custom_call.1} parent=1 // pred_fallthru
      _
    // Predicated region
    $region22: #{tpu_custom_call.1} parent=1 // pred_check
      _
    $region23: #{tpu_custom_call.1} parent=1 // pred_check_branch
      %800 = sbr.rel (0) target = $region25
    $region24: #{tpu_custom_call.1} parent=1 // pred_region
      %801 = dma.done [#allocation4], 768
    $region25: #{tpu_custom_call.1} parent=1 // pred_fallthru
      _
    %802 = vsyncpa [#allocation3], 1
    %803 = vsyncpa [#allocation6], 1
    %804 = vsyncpa [#allocation4], 1

</llo_original>
